<compile_context>
chip_gen: v5e
topology: v5e:2x2
jax: 0.10.0
libtpu: 0.0.40
codegen_flags: <defaults>
</compile_context>

<pallas_src>
import functools
import math

import numpy as np
import jax
import jax.numpy as jnp
from jax.experimental import pallas as pl
from jax.experimental.pallas import tpu as pltpu


# ----------------------------- Pallas kernel ------------------------------
def _add_pe_kernel(x_ref, pe_ref, o_ref, *, batch, d_model):
    # x_ref/o_ref : [TS, B*D]   pe_ref : [TS, D] (float32)
    pe = pe_ref[...]                                   # one D-wide vreg set, stays live
    for b in range(batch):                             # static unroll, no wide PE temp
        lo = b * d_model
        xb = x_ref[:, lo:lo + d_model].astype(jnp.float32)
        o_ref[:, lo:lo + d_model] = (xb + pe).astype(o_ref.dtype)


def _vmem_capacity_bytes():
    try:
        return int(pltpu.get_tpu_info().vmem_capacity_bytes)
    except Exception:
        return 64 * 1024 * 1024     # conservative (v7x per-TC VMEM)


def add_positional_encoding(x, pe_seq, *, force_pallas=False, max_rows_per_tile=None):
    """x: [S, B, D], pe_seq: [S, D] (f32)  ->  x + pe_seq[:, None, :]  ([S, B, D])."""
    S, B, D = x.shape
    x_item = jnp.dtype(x.dtype).itemsize
    pe_seq = pe_seq.astype(jnp.float32)
    out_dtype = jnp.result_type(x.dtype, pe_seq.dtype)
    out_item = jnp.dtype(out_dtype).itemsize

    # Tiny inputs: pallas_call fixed overhead dominates -> plain JAX.
    # TODO(synk): the real win for small shapes is fusing this add into the
    # adjacent embedding/attention kernel; as a standalone op it is HBM-bound.
    if (not force_pallas) and (S * B * D * x_item < (256 << 10)):
        return (x.astype(jnp.float32) + pe_seq[:, None, :]).astype(out_dtype)

    x2d = x.reshape(S, B * D)                 # free, contiguous reshape

    # -------- generation-aware VMEM budget & explicit compiler limit -------
    capacity = _vmem_capacity_bytes()         # 128 MiB v5e/v6e, 64 MiB v7x per TC
    vmem_budget = min(capacity // 4, 32 << 20)            # 16 MiB v7x, 32 MiB v5e/v6e
    vmem_limit = min(capacity // 2, 2 * vmem_budget)       # headroom for scratch

    # -------- sequence tile sizing (bytes-based, no fixed row cap) ---------
    row_mult = {4: 8, 2: 16, 1: 32}.get(x_item, 8)         # sublane packing per dtype
    bytes_per_row = B * D * x_item + B * D * out_item + D * 4   # x + out + pe(f32)
    ts = max(row_mult, vmem_budget // (2 * bytes_per_row))      # x2: double-buffered
    ts = int(min(ts, S))
    if max_rows_per_tile is not None:
        ts = min(ts, int(max_rows_per_tile))
    # v7x megacore: give the single parallel axis at least 2 steps when the
    # problem is big enough that the split overhead is negligible.
    if ts >= S and S >= 2 * row_mult and S * B * D * x_item >= (2 << 20):
        half = (S + 1) // 2
        ts = ((half + row_mult - 1) // row_mult) * row_mult
    if ts < S:
        ts = max(row_mult, (ts // row_mult) * row_mult)    # keep (8,128) tiling legal
    grid = (pl.cdiv(S, ts),)

    out2d = pl.pallas_call(
        functools.partial(_add_pe_kernel, batch=B, d_model=D),
        out_shape=jax.ShapeDtypeStruct((S, B * D), out_dtype),
        grid=grid,
        in_specs=[
            pl.BlockSpec((ts, B * D), lambda i: (i, 0)),
            pl.BlockSpec((ts, D), lambda i: (i, 0)),
        ],
        out_specs=pl.BlockSpec((ts, B * D), lambda i: (i, 0)),
        compiler_params=pltpu.CompilerParams(
            # Independent tiles -> shardable across v7x's 2 TensorCores.
            dimension_semantics=("parallel",),
            vmem_limit_bytes=int(vmem_limit),
        ),
        cost_estimate=pl.CostEstimate(
            flops=S * B * D,
            transcendentals=0,
            bytes_accessed=S * B * D * (x_item + out_item) + S * D * 4,
        ),
    )(x2d, pe_seq)
    return out2d.reshape(S, B, D)


# --------------------------- Module equivalent -----------------------------
class TQSPositionalEncoding2DPallas:
    def __init__(self, d_model, param_dim, max_system_size=None, key=None):
        if max_system_size is None:
            max_system_size = [50, 50]
        self.d_model = d_model
        self.max_system_size = np.array(max_system_size).reshape(-1)
        assert len(self.max_system_size) == 2
        x, y = int(self.max_system_size[0]), int(self.max_system_size[1])

        # learned parameter: Normal(std=0.02), deterministic via PRNGKey
        if key is None:
            key = jax.random.PRNGKey(0)
        self.param_embedding = (
            0.02 * jax.random.normal(key, (param_dim, 1, d_model), dtype=jnp.float32)
        )

        # sinusoidal 2D table (same math as the PyTorch __init__)
        channels = int(np.ceil(d_model / 4) * 2)
        div_term = jnp.exp(
            jnp.arange(0, channels, 2, dtype=jnp.float32)
            * (-math.log(10000.0) / channels)
        )
        pos_x = jnp.arange(x, dtype=jnp.float32)[:, None]
        pos_y = jnp.arange(y, dtype=jnp.float32)[:, None]
        sin_inp_x = pos_x * div_term   # [x, channels//2]
        sin_inp_y = pos_y * div_term   # [y, channels//2]

        emb_x = jnp.zeros((x, channels), dtype=jnp.float32)
        emb_x = emb_x.at[:, 0::2].set(jnp.sin(sin_inp_x))
        emb_x = emb_x.at[:, 1::2].set(jnp.cos(sin_inp_x))
        emb_y = jnp.zeros((y, channels), dtype=jnp.float32)
        emb_y = emb_y.at[:, 0::2].set(jnp.sin(sin_inp_y))
        emb_y = emb_y.at[:, 1::2].set(jnp.cos(sin_inp_y))

        pe = jnp.zeros((x, y, 2 * channels), dtype=jnp.float32)
        pe = pe.at[:, :, :channels].set(emb_x[:, None, :])
        pe = pe.at[:, :, channels:].set(emb_y[None, :, :])
        pe = pe[:, :, :d_model]                 # [x, y, d_model]
        self.pe = pe                            # (.unsqueeze(2) kept implicit)

        # Cache the fused table for the default (max) system size so forward
        # does not re-run reshape/concatenate/slice every call.
        self._pe_full_max = self._build_pe_full(x, y)

    def _build_pe_full(self, sx, sy):
        pe_grid = self.pe[:sx, :sy].reshape(-1, self.d_model)          # [sx*sy, D]
        param_emb = self.param_embedding.reshape(-1, self.d_model)     # [param_dim, D]
        return jnp.concatenate([param_emb, pe_grid], axis=0)           # [param_dim+sx*sy, D]

    def __call__(self, x, system_size=None, force_pallas=False):
        # x: [S, B, D]
        if system_size is None:
            pe_full = self._pe_full_max
        else:
            sx, sy = int(system_size[0]), int(system_size[1])
            if sx == int(self.max_system_size[0]) and sy == int(self.max_system_size[1]):
                pe_full = self._pe_full_max
            else:
                pe_full = self._build_pe_full(sx, sy)

        S = x.shape[0]
        assert S <= pe_full.shape[0], (
            f"seq_len {S} exceeds param_dim + sx*sy = {pe_full.shape[0]}"
        )
        pe_seq = pe_full[:S]                                           # [S, D] f32
        out = add_positional_encoding(x, pe_seq, force_pallas=force_pallas)
        # dropout p=0 -> identity (inference)
        # TODO(synk): stochastic dropout (p>0) not implemented; module defaults to p=0.
        return out


# ------------------------------- test ---------------------------------------
if __name__ == "__main__":
    # -------- case 1: tiny shape (matches the module's nominal use) ---------
    d_model, param_dim, seq_len, batch = 32, 4, 8, 2
    key = jax.random.PRNGKey(0)
    k_param, k_x, k_x2 = jax.random.split(key, 3)

    mod = TQSPositionalEncoding2DPallas(
        d_model, param_dim, max_system_size=[6, 6], key=k_param
    )
    x = jax.random.normal(k_x, (seq_len, batch, d_model), dtype=jnp.float32)

    pe_full = jnp.concatenate(
        [mod.param_embedding.reshape(-1, d_model), mod.pe.reshape(-1, d_model)], axis=0
    )
    ref = x + pe_full[:seq_len][:, None, :]

    out_fast = jax.block_until_ready(mod(x))                       # plain-JAX fast path
    out_pal = jax.block_until_ready(mod(x, force_pallas=True))     # Pallas path, grid=1
    np.testing.assert_allclose(np.asarray(out_fast), np.asarray(ref), rtol=1e-6, atol=1e-6)
    np.testing.assert_allclose(np.asarray(out_pal), np.asarray(ref), rtol=1e-6, atol=1e-6)

    # -------- case 2: medium shape, multi-tile grid + per-batch chunk loop --
    d_model2, param_dim2, seq2, batch2 = 128, 4, 96, 4
    mod2 = TQSPositionalEncoding2DPallas(
        d_model2, param_dim2, max_system_size=[10, 10], key=k_param
    )
    x2 = jax.random.normal(k_x2, (seq2, batch2, d_model2), dtype=jnp.float32)
    pe_full2 = jnp.concatenate(
        [mod2.param_embedding.reshape(-1, d_model2), mod2.pe.reshape(-1, d_model2)],
        axis=0,
    )
    ref2 = x2 + pe_full2[:seq2][:, None, :]

    # Force a 3-step grid to exercise the pipelined multi-tile path.
    out2 = add_positional_encoding(
        x2, pe_full2[:seq2], force_pallas=True, max_rows_per_tile=32
    )
    out2 = jax.block_until_ready(out2)
    np.testing.assert_allclose(np.asarray(out2), np.asarray(ref2), rtol=1e-6, atol=1e-6)

    out2_mod = jax.block_until_ready(mod2(x2, force_pallas=True))  # single-tile path
    np.testing.assert_allclose(np.asarray(out2_mod), np.asarray(ref2), rtol=1e-6, atol=1e-6)

    print("KERNEL_OK")
</pallas_src>

<mosaic_0001>
module attributes {stable_mosaic.version = 11 : i64} {
  func.func @_add_pe_kernel(%arg0: i32, %arg1: memref<8x64xf32, #tpu.memory_space<vmem>>, %arg2: memref<8x32xf32, #tpu.memory_space<vmem>>, %arg3: memref<8x64xf32, #tpu.memory_space<vmem>>) attributes {dimension_semantics = [#tpu.dimension_semantics<parallel>], iteration_bounds = array<i64: 1>, scalar_prefetch = 0 : i64, scratch_operands = 0 : i64, tpu.core_type = #tpu.core_type<tc>, window_params = [{transform_indices = @transform_0, window_bounds = array<i64: 8, 64>}, {transform_indices = @transform_1, window_bounds = array<i64: 8, 32>}, {transform_indices = @transform_2, window_bounds = array<i64: 8, 64>}]} {
    %c0 = arith.constant 0 : index
    %c0_0 = arith.constant 0 : index
    %0 = vector.load %arg2[%c0, %c0_0] : memref<8x32xf32, #tpu.memory_space<vmem>>, vector<8x32xf32>
    %c0_1 = arith.constant 0 : index
    %c0_2 = arith.constant 0 : index
    %1 = vector.load %arg1[%c0_1, %c0_2] : memref<8x64xf32, #tpu.memory_space<vmem>>, vector<8x32xf32>
    %2 = arith.addf %1, %0 : vector<8x32xf32>
    %c0_3 = arith.constant 0 : index
    %c0_4 = arith.constant 0 : index
    %3 = vector.load %arg3[%c0_3, %c0_4] : memref<8x64xf32, #tpu.memory_space<vmem>>, vector<8x32xf32>
    tpu.vector_store %arg3[%c0_3, %c0_4], %2 {strides = array<i32>} : memref<8x64xf32, #tpu.memory_space<vmem>>, vector<8x32xf32>,
    %c0_5 = arith.constant 0 : index
    %c32 = arith.constant 32 : index
    %4 = vector.load %arg1[%c0_5, %c32] : memref<8x64xf32, #tpu.memory_space<vmem>>, vector<8x32xf32>
    %5 = arith.addf %4, %0 : vector<8x32xf32>
    %c0_6 = arith.constant 0 : index
    %c32_7 = arith.constant 32 : index
    %6 = vector.load %arg3[%c0_6, %c32_7] : memref<8x64xf32, #tpu.memory_space<vmem>>, vector<8x32xf32>
    tpu.vector_store %arg3[%c0_6, %c32_7], %5 {strides = array<i32>} : memref<8x64xf32, #tpu.memory_space<vmem>>, vector<8x32xf32>,
    return
  }
  func.func @transform_0(%arg0: i32) -> (i32, i32) {
    %c0_i32 = arith.constant 0 : i32
    %c0_i32_0 = arith.constant 0 : i32
    return %arg0, %c0_i32 : i32, i32
  }
  func.func @transform_1(%arg0: i32) -> (i32, i32) {
    %c0_i32 = arith.constant 0 : i32
    %c0_i32_0 = arith.constant 0 : i32
    return %arg0, %c0_i32 : i32, i32
  }
  func.func @transform_2(%arg0: i32) -> (i32, i32) {
    %c0_i32 = arith.constant 0 : i32
    %c0_i32_0 = arith.constant 0 : i32
    return %arg0, %c0_i32 : i32, i32
  }
}

</mosaic_0001>

<llo_original>
// kernel: tpu_custom_call.1
$region0: #{tpu_custom_call.1}
  #allocation0 [shape = 'u32[]', space=smem, size = 0x4, offset = 0x4, fixed_abs, tag = 'smem constant byte address 0x4 - core index']
  #allocation1 [shape = 'u32[72,128]{1,0:T(1,128)}', space=vmem, size = 0x9000, scoped, tag = 'internal scratch']
  %s0 = inlined_call_operand.hbm [shape: f32[8,64], index: 0, kind: input, shape index: {}]
  %s1 = inlined_call_operand.hbm [shape: f32[8,32], index: 1, kind: input, shape index: {}]
  %s2 = inlined_call_operand.hbm [shape: f32[8,64], index: 2, kind: output, shape index: {}]
  %s3 = sld [smem:[#allocation0]]
  $region26: #{tpu_custom_call.1} parent=0
    _
  %s5 = ssub.s32 1, %s3
  %s6 = scalar_select 0, %s5, %s3
  $region1: #{tpu_custom_call.1} parent=0
    #allocation2 [shape = 'u8[4096]{0}', space=vmem, size = 0x1000, scoped, tag = 'input window, operand 0, single buffered']
    #allocation3 [shape = 's32[1]{0}', space=sflag, size = 0x4, scoped, tag = 'scoped memory for tpu_custom_call.1']
    #allocation4 [shape = 's32[1]{0}', space=sflag, size = 0x4, scoped, tag = 'scoped memory for tpu_custom_call.1']
    #allocation5 [shape = 'u8[4096]{0}', space=vmem, size = 0x1000, scoped, tag = 'input window, operand 1, single buffered']
    #allocation6 [shape = 's32[1]{0}', space=sflag, size = 0x4, scoped, tag = 'scoped memory for tpu_custom_call.1']
    #allocation7 [shape = 'u8[4096]{0}', space=vmem, size = 0x1000, scoped, tag = 'output window, operand 0, single buffered']
    %7 = vsyncpa [#allocation3], 0
    %8 = vsyncpa [#allocation6], 0
    %9 = vsyncpa [#allocation4], 0
    // Predicated region
    $region2: #{tpu_custom_call.1} parent=1 // pred_check
      _
    $region3: #{tpu_custom_call.1} parent=1 // pred_check_branch
      %11 = sbr.rel (0) target = $region5
    $region4: #{tpu_custom_call.1} parent=1 // pred_region
      %13 = vsyncadd [#allocation3], 0
      %s15 = sshll.u32 %s0, 4
      %s16 = int_to_ptr.hbm [resolvable:$true] %s15
      %s17 = sshll.u32 [#allocation2], 4
      %s18 = int_to_ptr.vmem [resolvable:$true] %s17
      %20 = dma.hbm_to_vmem [thread:$0]  %s16, 128, %s18, [#allocation3]
    $region5: #{tpu_custom_call.1} parent=1 // pred_fallthru
      _
    // Predicated region
    $region6: #{tpu_custom_call.1} parent=1 // pred_check
      _
    $region7: #{tpu_custom_call.1} parent=1 // pred_check_branch
      %22 = sbr.rel (0) target = $region9
    $region8: #{tpu_custom_call.1} parent=1 // pred_region
      %24 = vsyncadd [#allocation6], 0
      %s26 = sshll.u32 %s1, 4
      %s27 = int_to_ptr.hbm [resolvable:$true] %s26
      %s28 = sshll.u32 [#allocation5], 4
      %s29 = int_to_ptr.vmem [resolvable:$true] %s28
      %31 = dma.hbm_to_vmem [thread:$0]  %s27, 128, %s29, [#allocation6]
    $region9: #{tpu_custom_call.1} parent=1 // pred_fallthru
      _
    // Predicated region
    $region10: #{tpu_custom_call.1} parent=1 // pred_check
      _
    $region11: #{tpu_custom_call.1} parent=1 // pred_check_branch
      %33 = sbr.rel (0) target = $region13
    $region12: #{tpu_custom_call.1} parent=1 // pred_region
      %35 = dma.done [#allocation3], 128
    $region13: #{tpu_custom_call.1} parent=1 // pred_fallthru
      _
    // Predicated region
    $region14: #{tpu_custom_call.1} parent=1 // pred_check
      _
    $region15: #{tpu_custom_call.1} parent=1 // pred_check_branch
      %37 = sbr.rel (0) target = $region17
    $region16: #{tpu_custom_call.1} parent=1 // pred_region
      %39 = dma.done [#allocation6], 128
    $region17: #{tpu_custom_call.1} parent=1 // pred_fallthru
      _
    %v40 = vld [vmem:[#allocation5] sm:$0xff]
    %v41 = vld [vmem:[#allocation2] sm:$0xff]
    %v42 = vadd.f32 %v41, %v40
    %vm43 = vcmask 261120
    %44 = vst.msk [vmem:[#allocation7] sm:$0xff] %vm43, %v42
    %v45 = vld [vmem:[#allocation2] sm:$0xff]
    %47 = vrot.lane.b32.xlu0 %v40, 32
    %v48 = vpop.permute.xlu0 %47
    %v50 = vadd.f32 %v45, %v48
    %vm51 = vcmask 523520
    %52 = vst.msk [vmem:[#allocation7] sm:$0xff] %vm51, %v50
    // Predicated region
    $region18: #{tpu_custom_call.1} parent=1 // pred_check
      _
    $region19: #{tpu_custom_call.1} parent=1 // pred_check_branch
      %54 = sbr.rel (0) target = $region21
    $region20: #{tpu_custom_call.1} parent=1 // pred_region
      %56 = vsyncadd [#allocation4], 0
      %s58 = sshll.u32 [#allocation7], 4
      %s59 = int_to_ptr.vmem [resolvable:$true] %s58
      %s60 = sshll.u32 %s2, 4
      %s61 = int_to_ptr.hbm [resolvable:$true] %s60
      %63 = dma.vmem_to_hbm [thread:$0]  %s59, 128, %s61, [#allocation4]
    $region21: #{tpu_custom_call.1} parent=1 // pred_fallthru
      _
    // Predicated region
    $region22: #{tpu_custom_call.1} parent=1 // pred_check
      _
    $region23: #{tpu_custom_call.1} parent=1 // pred_check_branch
      %65 = sbr.rel (0) target = $region25
    $region24: #{tpu_custom_call.1} parent=1 // pred_region
      %67 = dma.done [#allocation4], 128
    $region25: #{tpu_custom_call.1} parent=1 // pred_fallthru
      _
    %68 = vsyncpa [#allocation3], 1
    %69 = vsyncpa [#allocation6], 1
    %70 = vsyncpa [#allocation4], 1

</llo_original>
